<compile_context>
chip_gen: v7x
topology: tpu7x:2x2x1
jax: 0.10.0
libtpu: 0.0.40
codegen_flags: <defaults>
</compile_context>

<pallas_src>
import math

import jax
import jax.numpy as jnp
from jax.experimental import pallas as pl
from jax.experimental.pallas import tpu as pltpu


# ----------------------------------------------------------------------------
# Pallas kernel
# ----------------------------------------------------------------------------
def make_residual_block_kernel(K, d, pad, pad_al, Tt, nT, relu2, use_conv3,
                               compute_dtype):
    """Fused residual block for one (batch, time-tile) grid step."""

    def kernel(x_ref, w1_ref, b1_ref, w2_ref, b2_ref, *rest):
        if use_conv3:
            w3_ref, b3_ref, *rest = rest
        y_ref, *scratches = rest
        if pad > 0:
            xp_s, hp_s = scratches

        j = pl.program_id(1)
        x = x_ref[0]                                     # (C_in_p, Tt) bf16

        if pad > 0:
            # Zero the (128-wide, lane-aligned) halo region at the first tile
            # of every batch element.
            @pl.when(j == 0)
            def _():
                xp_s[:, :pad_al] = jnp.zeros((xp_s.shape[0], pad_al), xp_s.dtype)
                hp_s[:, :pad_al] = jnp.zeros((hp_s.shape[0], pad_al), hp_s.dtype)

            # Lane-aligned full-tile store (pad_al is a multiple of 128).
            xp_s[:, pad_al:pad_al + Tt] = x

        def dilated_conv(w_ref, b_ref, halo_s, cur):
            """K accumulated MXU dots over lane-shifted causal views."""
            acc = None
            for k in range(K):
                if pad == 0 or k == K - 1:
                    v = cur                              # shift 0: in-register
                else:
                    s = pad_al - pad + k * d             # static column start
                    v = halo_s[:, s:s + Tt]
                t = jnp.dot(w_ref[k], v, preferred_element_type=jnp.float32)
                acc = t if acc is None else acc + t
            return acc + b_ref[...]

        # ---- conv1 (dilated, causal) + ReLU (dropout = identity) ------------
        h1 = jnp.maximum(
            dilated_conv(w1_ref, b1_ref, xp_s if pad > 0 else None, x), 0.0)
        h1c = h1.astype(compute_dtype)
        if pad > 0:
            hp_s[:, pad_al:pad_al + Tt] = h1c

        # ---- conv2 (dilated, causal) ----------------------------------------
        acc2 = dilated_conv(w2_ref, b2_ref, hp_s if pad > 0 else None, h1c)
        if relu2:                                        # not on the last block
            acc2 = jnp.maximum(acc2, 0.0)
        # dropout = identity (eval)

        # ---- residual branch -------------------------------------------------
        if use_conv3:
            res = jnp.dot(w3_ref[...], x,
                          preferred_element_type=jnp.float32) + b3_ref[...]
        else:
            res = x.astype(jnp.float32)                  # C_in_p == C_out_p here

        y_ref[0] = (acc2 + res).astype(y_ref.dtype)

        # ---- carry the causal halo into the next time tile -------------------
        if pad > 0 and nT > 1:
            @pl.when(j + 1 < nT)                          # skip on last tile
            def _():
                xp_s[:, pad_al - pad:pad_al] = xp_s[:, pad_al + Tt - pad:pad_al + Tt]
                hp_s[:, pad_al - pad:pad_al] = hp_s[:, pad_al + Tt - pad:pad_al + Tt]

    return kernel


# ----------------------------------------------------------------------------
# Wrapper helpers
# ----------------------------------------------------------------------------
def _round_up(n, m):
    return ((n + m - 1) // m) * m


def _vmem_footprint(Tt, pad, pad_al, c_in_p, f_p, c_out_p, K, cb=2):
    """Rough per-step VMEM bytes: double-buffered I/O blocks, halo scratches,
    live f32 temporaries and (double-buffered) weights."""
    io = 2 * (c_in_p * Tt * cb) + 2 * (c_out_p * Tt * 4)
    scr = (c_in_p + f_p) * (pad_al + Tt) * cb if pad > 0 else 0
    acc = (f_p + 2 * c_out_p) * Tt * 4
    wts = 2 * cb * (K * (f_p * c_in_p + c_out_p * f_p) + c_out_p * c_in_p) \
        + 2 * 4 * (f_p + 2 * c_out_p)
    return io + scr + acc + wts


def _pick_time_tile(T, pad, pad_al, c_in_p, f_p, c_out_p, K, budget):
    """Largest lane-dense time tile whose footprint fits the VMEM budget."""
    if _vmem_footprint(T, pad, pad_al, c_in_p, f_p, c_out_p, K) <= budget:
        return T
    start = T - (T % 128)
    for tt in range(start, 127, -128):
        if (T % tt == 0 and tt >= max(pad, 1)
                and _vmem_footprint(tt, pad, pad_al, c_in_p, f_p, c_out_p, K) <= budget):
            return tt
    return T


# ----------------------------------------------------------------------------
# Wrapper: parameter plumbing + pallas_call
# ----------------------------------------------------------------------------
def residual_block_forward(x, params, *, kernel_size, dilation, relu2,
                           time_tile=None, compute_dtype=jnp.bfloat16,
                           channel_align=8, vmem_budget=24 << 20):
    """x: (B, C_in, T) float32.  params hold PyTorch-layout (O, I, K) weights."""
    B, C_in, T = x.shape
    K = kernel_size
    d = dilation
    pad = d * (K - 1)
    pad_al = _round_up(pad, 128) if pad > 0 else 0

    w1 = params["w1"]                     # (F, C_in, K)
    w2 = params["w2"]                     # (C_out, F, K)
    F_ = w1.shape[0]
    C_out = w2.shape[0]
    use_conv3 = "w3" in params

    # Sublane-aligned channel padding (padded rows/cols are exact zeros).
    C_in_p = _round_up(C_in, channel_align)
    F_p = _round_up(F_, channel_align)
    C_out_p = _round_up(C_out, channel_align)

    def pad_taps(w, o, o_p, i, i_p):
        wt = jnp.transpose(w, (2, 0, 1))                 # (K, O, I)
        return jnp.pad(wt, ((0, 0), (0, o_p - o), (0, i_p - i))).astype(compute_dtype)

    def pad_bias(b, o, o_p):
        return jnp.pad(b, (0, o_p - o)).reshape(o_p, 1).astype(jnp.float32)

    w1s = pad_taps(w1, F_, F_p, C_in, C_in_p)            # (K, F_p, C_in_p) bf16
    b1s = pad_bias(params["b1"], F_, F_p)
    w2s = pad_taps(w2, C_out, C_out_p, F_, F_p)          # (K, C_out_p, F_p) bf16
    b2s = pad_bias(params["b2"], C_out, C_out_p)

    # bf16 activations into the kernel (halves HBM traffic on the big array).
    x_p = jnp.pad(x.astype(compute_dtype),
                  ((0, 0), (0, C_in_p - C_in), (0, 0)))

    Tt = time_tile if time_tile is not None else _pick_time_tile(
        T, pad, pad_al, C_in_p, F_p, C_out_p, K, vmem_budget)
    assert T % Tt == 0, (T, Tt)
    assert Tt == T or Tt % 128 == 0, Tt
    nT = T // Tt
    if nT > 1:
        assert Tt >= pad, "time tile must cover the causal halo"

    inputs = [x_p, w1s, b1s, w2s, b2s]
    in_specs = [
        pl.BlockSpec((1, C_in_p, Tt), lambda b, j: (b, 0, j)),
        pl.BlockSpec((K, F_p, C_in_p), lambda b, j: (0, 0, 0)),
        pl.BlockSpec((F_p, 1), lambda b, j: (0, 0)),
        pl.BlockSpec((K, C_out_p, F_p), lambda b, j: (0, 0, 0)),
        pl.BlockSpec((C_out_p, 1), lambda b, j: (0, 0)),
    ]
    if use_conv3:
        w3s = jnp.pad(params["w3"][:, :, 0],
                      ((0, C_out_p - C_out), (0, C_in_p - C_in))).astype(compute_dtype)
        b3s = pad_bias(params["b3"], C_out, C_out_p)
        inputs += [w3s, b3s]
        in_specs += [pl.BlockSpec((C_out_p, C_in_p), lambda b, j: (0, 0)),
                     pl.BlockSpec((C_out_p, 1), lambda b, j: (0, 0))]

    scratch_shapes = []
    if pad > 0:
        scratch_shapes = [pltpu.VMEM((C_in_p, pad_al + Tt), compute_dtype),
                          pltpu.VMEM((F_p, pad_al + Tt), compute_dtype)]

    kernel = make_residual_block_kernel(K, d, pad, pad_al, Tt, nT, relu2,
                                        use_conv3, compute_dtype)

    footprint = _vmem_footprint(Tt, pad, pad_al, C_in_p, F_p, C_out_p, K)
    vmem_limit = int(min(100 << 20, max(32 << 20, int(footprint * 1.5))))

    y_p = pl.pallas_call(
        kernel,
        out_shape=jax.ShapeDtypeStruct((B, C_out_p, T), x.dtype),
        grid=(B, nT),
        in_specs=in_specs,
        out_specs=pl.BlockSpec((1, C_out_p, Tt), lambda b, j: (b, 0, j)),
        scratch_shapes=scratch_shapes,
        compiler_params=pltpu.CompilerParams(
            dimension_semantics=("parallel", "arbitrary"),
            vmem_limit_bytes=vmem_limit),
    )(*inputs)
    return y_p[:, :C_out, :]


# ----------------------------------------------------------------------------
# Pure-JAX reference (mirrors the PyTorch forward exactly, dropout = identity)
# ----------------------------------------------------------------------------
def reference_forward(x, params, *, kernel_size, dilation, relu2):
    pad = dilation * (kernel_size - 1)

    def conv1d(h, w, b, dil):
        y = jax.lax.conv_general_dilated(
            h, w, window_strides=(1,), padding="VALID",
            rhs_dilation=(dil,), dimension_numbers=("NCH", "OIH", "NCH"))
        return y + b[None, :, None]

    residual = x
    h = jnp.pad(x, ((0, 0), (0, 0), (pad, 0)))
    h = jax.nn.relu(conv1d(h, params["w1"], params["b1"], dilation))
    h = jnp.pad(h, ((0, 0), (0, 0), (pad, 0)))
    h = conv1d(h, params["w2"], params["b2"], dilation)
    if relu2:
        h = jax.nn.relu(h)
    if "w3" in params:
        residual = conv1d(residual, params["w3"], params["b3"], 1)
    return h + residual


# ----------------------------------------------------------------------------
# Deterministic parameter init (PyTorch Conv1d-style uniform bounds)
# ----------------------------------------------------------------------------
def init_conv(key, c_out, c_in, k):
    k1, k2 = jax.random.split(key)
    bound = 1.0 / math.sqrt(c_in * k)
    w = jax.random.uniform(k1, (c_out, c_in, k), jnp.float32, -bound, bound)
    b = jax.random.uniform(k2, (c_out,), jnp.float32, -bound, bound)
    return w, b


def build_block_params(key, *, num_filters, kernel_size, dilation_base,
                       nr_blocks_below, num_layers, input_channel_size,
                       target_size):
    input_dim = input_channel_size if nr_blocks_below == 0 else num_filters
    output_dim = target_size if nr_blocks_below == num_layers - 1 else num_filters
    k1, k2, k3 = jax.random.split(key, 3)
    p = {}
    p["w1"], p["b1"] = init_conv(k1, num_filters, input_dim, kernel_size)
    p["w2"], p["b2"] = init_conv(k2, output_dim, num_filters, kernel_size)
    if input_dim != output_dim:
        p["w3"], p["b3"] = init_conv(k3, output_dim, input_dim, 1)
    dilation = dilation_base ** nr_blocks_below
    relu2 = nr_blocks_below < num_layers - 1
    return p, input_dim, output_dim, dilation, relu2


# ----------------------------------------------------------------------------
if __name__ == "__main__":
    key = jax.random.PRNGKey(0)
    B = 2

    configs = [
        # conv3 present, ReLU on conv2, d=1
        dict(nr_blocks_below=0, num_layers=3, input_channel_size=4,
             num_filters=8, target_size=3, T=128, time_tile=None),
        # no conv3, ReLU on conv2, d=2
        dict(nr_blocks_below=1, num_layers=3, input_channel_size=4,
             num_filters=8, target_size=3, T=128, time_tile=None),
        # conv3 present, last block (no ReLU on conv2), d=4
        dict(nr_blocks_below=2, num_layers=3, input_channel_size=4,
             num_filters=8, target_size=4, T=128, time_tile=None),
        # multi-tile time axis: exercises the causal halo carry (nT=3)
        dict(nr_blocks_below=1, num_layers=3, input_channel_size=4,
             num_filters=8, target_size=3, T=384, time_tile=128),
    ]

    for i, cfg in enumerate(configs):
        T = cfg.pop("T")
        time_tile = cfg.pop("time_tile")
        kp, kx = jax.random.split(jax.random.fold_in(key, i))
        params, c_in, c_out, dilation, relu2 = build_block_params(
            kp, kernel_size=3, dilation_base=2, **cfg)
        x = jax.random.normal(kx, (B, c_in, T), jnp.float32)

        y = residual_block_forward(x, params, kernel_size=3, dilation=dilation,
                                   relu2=relu2, time_tile=time_tile)
        y = jax.block_until_ready(y)
        y_ref = reference_forward(x, params, kernel_size=3, dilation=dilation,
                                  relu2=relu2)

        assert y.shape == (B, c_out, T), (y.shape, (B, c_out, T))
        max_err = float(jnp.max(jnp.abs(y - y_ref)))
        # bf16 activations/weights in the kernel -> loosened tolerance vs the
        # f32 reference (documented inference-precision choice).
        assert jnp.allclose(y, y_ref, atol=5e-2, rtol=5e-2), (
            f"mismatch in config {i}: max abs err {max_err}")

    print("KERNEL_OK")
</pallas_src>

<mosaic_0001>
module attributes {stable_mosaic.version = 11 : i64} {
  func.func @kernel(%arg0: i32, %arg1: i32, %arg2: memref<1x8x128xbf16, #tpu.memory_space<vmem>>, %arg3: memref<3x8x8xbf16, #tpu.memory_space<vmem>>, %arg4: memref<8x1xf32, #tpu.memory_space<vmem>>, %arg5: memref<3x8x8xbf16, #tpu.memory_space<vmem>>, %arg6: memref<8x1xf32, #tpu.memory_space<vmem>>, %arg7: memref<8x8xbf16, #tpu.memory_space<vmem>>, %arg8: memref<8x1xf32, #tpu.memory_space<vmem>>, %arg9: memref<1x8x128xf32, #tpu.memory_space<vmem>>, %arg10: memref<8x256xbf16, #tpu.memory_space<vmem>>, %arg11: memref<8x256xbf16, #tpu.memory_space<vmem>>) attributes {dimension_semantics = [#tpu.dimension_semantics<parallel>, #tpu.dimension_semantics<arbitrary>], iteration_bounds = array<i64: 2, 1>, scalar_prefetch = 0 : i64, scratch_operands = 2 : i64, tpu.core_type = #tpu.core_type<tc>, window_params = [{transform_indices = @transform_0, window_bounds = array<i64: 1, 8, 128>}, {pipeline_mode = #tpu.pipeline_mode<synchronous>, transform_indices = @transform_1, window_bounds = array<i64: 3, 8, 8>}, {pipeline_mode = #tpu.pipeline_mode<synchronous>, transform_indices = @transform_2, window_bounds = array<i64: 8, 1>}, {pipeline_mode = #tpu.pipeline_mode<synchronous>, transform_indices = @transform_3, window_bounds = array<i64: 3, 8, 8>}, {pipeline_mode = #tpu.pipeline_mode<synchronous>, transform_indices = @transform_4, window_bounds = array<i64: 8, 1>}, {pipeline_mode = #tpu.pipeline_mode<synchronous>, transform_indices = @transform_5, window_bounds = array<i64: 8, 8>}, {pipeline_mode = #tpu.pipeline_mode<synchronous>, transform_indices = @transform_6, window_bounds = array<i64: 8, 1>}, {transform_indices = @transform_7, window_bounds = array<i64: 1, 8, 128>}]} {
    %c0 = arith.constant 0 : index
    %c0_0 = arith.constant 0 : index
    %c0_1 = arith.constant 0 : index
    %0 = vector.load %arg2[%c0, %c0_0, %c0_1] : memref<1x8x128xbf16, #tpu.memory_space<vmem>>, vector<1x8x128xbf16>
    %1 = vector.shape_cast %0 : vector<1x8x128xbf16> to vector<8x128xbf16>
    %c0_i32 = arith.constant 0 : i32
    %2 = arith.cmpi eq, %arg1, %c0_i32 : i32
    %3 = arith.extui %2 : i1 to i32
    %c0_i32_2 = arith.constant 0 : i32
    %4 = arith.cmpi ne, %3, %c0_i32_2 : i32
    scf.if %4 {
      %cst_47 = arith.constant 0.000000e+00 : bf16
      %53 = vector.broadcast %cst_47 : bf16 to vector<8x128xbf16>
      %c0_48 = arith.constant 0 : index
      %c0_49 = arith.constant 0 : index
      %54 = vector.load %arg10[%c0_48, %c0_49] : memref<8x256xbf16, #tpu.memory_space<vmem>>, vector<8x128xbf16>
      tpu.vector_store %arg10[%c0_48, %c0_49], %53 {strides = array<i32>} : memref<8x256xbf16, #tpu.memory_space<vmem>>, vector<8x128xbf16>,
      %cst_50 = arith.constant 0.000000e+00 : bf16
      %55 = vector.broadcast %cst_50 : bf16 to vector<8x128xbf16>
      %c0_51 = arith.constant 0 : index
      %c0_52 = arith.constant 0 : index
      %56 = vector.load %arg11[%c0_51, %c0_52] : memref<8x256xbf16, #tpu.memory_space<vmem>>, vector<8x128xbf16>
      tpu.vector_store %arg11[%c0_51, %c0_52], %55 {strides = array<i32>} : memref<8x256xbf16, #tpu.memory_space<vmem>>, vector<8x128xbf16>,
    } else {
    }
    %c0_3 = arith.constant 0 : index
    %c128 = arith.constant 128 : index
    %5 = vector.load %arg10[%c0_3, %c128] : memref<8x256xbf16, #tpu.memory_space<vmem>>, vector<8x128xbf16>
    tpu.vector_store %arg10[%c0_3, %c128], %1 {strides = array<i32>} : memref<8x256xbf16, #tpu.memory_space<vmem>>, vector<8x128xbf16>,
    %c0_4 = arith.constant 0 : index
    %c126 = arith.constant 126 : index
    %6 = vector.load %arg10[%c0_4, %c126] : memref<8x256xbf16, #tpu.memory_space<vmem>>, vector<8x128xbf16>
    %c0_5 = arith.constant 0 : index
    %c0_6 = arith.constant 0 : index
    %c0_7 = arith.constant 0 : index
    %7 = vector.load %arg3[%c0_5, %c0_6, %c0_7] : memref<3x8x8xbf16, #tpu.memory_space<vmem>>, vector<1x8x8xbf16>
    %8 = vector.shape_cast %7 : vector<1x8x8xbf16> to vector<8x8xbf16>
    %cst = arith.constant dense<0.000000e+00> : vector<8x128xf32>
    %9 = tpu.matmul %8, %6, %cst {dimension_numbers = #tpu.dot_dimension_numbers<[1], [0], [0], [1], [0, 0, 1, 1], [], []>} : vector<8x8xbf16>, vector<8x128xbf16>, vector<8x128xf32> -> vector<8x128xf32>
    %c0_8 = arith.constant 0 : index
    %c127 = arith.constant 127 : index
    %10 = vector.load %arg10[%c0_8, %c127] : memref<8x256xbf16, #tpu.memory_space<vmem>>, vector<8x128xbf16>
    %c1 = arith.constant 1 : index
    %c0_9 = arith.constant 0 : index
    %c0_10 = arith.constant 0 : index
    %11 = vector.load %arg3[%c1, %c0_9, %c0_10] : memref<3x8x8xbf16, #tpu.memory_space<vmem>>, vector<1x8x8xbf16>
    %12 = vector.shape_cast %11 : vector<1x8x8xbf16> to vector<8x8xbf16>
    %cst_11 = arith.constant dense<0.000000e+00> : vector<8x128xf32>
    %13 = tpu.matmul %12, %10, %cst_11 {dimension_numbers = #tpu.dot_dimension_numbers<[1], [0], [0], [1], [0, 0, 1, 1], [], []>} : vector<8x8xbf16>, vector<8x128xbf16>, vector<8x128xf32> -> vector<8x128xf32>
    %14 = arith.addf %9, %13 : vector<8x128xf32>
    %c2 = arith.constant 2 : index
    %c0_12 = arith.constant 0 : index
    %c0_13 = arith.constant 0 : index
    %15 = vector.load %arg3[%c2, %c0_12, %c0_13] : memref<3x8x8xbf16, #tpu.memory_space<vmem>>, vector<1x8x8xbf16>
    %16 = vector.shape_cast %15 : vector<1x8x8xbf16> to vector<8x8xbf16>
    %cst_14 = arith.constant dense<0.000000e+00> : vector<8x128xf32>
    %17 = tpu.matmul %16, %1, %cst_14 {dimension_numbers = #tpu.dot_dimension_numbers<[1], [0], [0], [1], [0, 0, 1, 1], [], []>} : vector<8x8xbf16>, vector<8x128xbf16>, vector<8x128xf32> -> vector<8x128xf32>
    %18 = arith.addf %14, %17 : vector<8x128xf32>
    %c0_15 = arith.constant 0 : index
    %c0_16 = arith.constant 0 : index
    %19 = vector.load %arg4[%c0_15, %c0_16] : memref<8x1xf32, #tpu.memory_space<vmem>>, vector<8x1xf32>
    %20 = vector.broadcast %19 : vector<8x1xf32> to vector<8x128xf32>
    %21 = arith.addf %18, %20 : vector<8x128xf32>
    %cst_17 = arith.constant 0.000000e+00 : f32
    %22 = vector.broadcast %cst_17 : f32 to vector<8x128xf32>
    %23 = arith.maximumf %21, %22 : vector<8x128xf32>
    %24 = arith.truncf %23 : vector<8x128xf32> to vector<8x128xbf16>
    %c0_18 = arith.constant 0 : index
    %c128_19 = arith.constant 128 : index
    %25 = vector.load %arg11[%c0_18, %c128_19] : memref<8x256xbf16, #tpu.memory_space<vmem>>, vector<8x128xbf16>
    tpu.vector_store %arg11[%c0_18, %c128_19], %24 {strides = array<i32>} : memref<8x256xbf16, #tpu.memory_space<vmem>>, vector<8x128xbf16>,
    %c0_20 = arith.constant 0 : index
    %c126_21 = arith.constant 126 : index
    %26 = vector.load %arg11[%c0_20, %c126_21] : memref<8x256xbf16, #tpu.memory_space<vmem>>, vector<8x128xbf16>
    %c0_22 = arith.constant 0 : index
    %c0_23 = arith.constant 0 : index
    %c0_24 = arith.constant 0 : index
    %27 = vector.load %arg5[%c0_22, %c0_23, %c0_24] : memref<3x8x8xbf16, #tpu.memory_space<vmem>>, vector<1x8x8xbf16>
    %28 = vector.shape_cast %27 : vector<1x8x8xbf16> to vector<8x8xbf16>
    %cst_25 = arith.constant dense<0.000000e+00> : vector<8x128xf32>
    %29 = tpu.matmul %28, %26, %cst_25 {dimension_numbers = #tpu.dot_dimension_numbers<[1], [0], [0], [1], [0, 0, 1, 1], [], []>} : vector<8x8xbf16>, vector<8x128xbf16>, vector<8x128xf32> -> vector<8x128xf32>
    %c0_26 = arith.constant 0 : index
    %c127_27 = arith.constant 127 : index
    %30 = vector.load %arg11[%c0_26, %c127_27] : memref<8x256xbf16, #tpu.memory_space<vmem>>, vector<8x128xbf16>
    %c1_28 = arith.constant 1 : index
    %c0_29 = arith.constant 0 : index
    %c0_30 = arith.constant 0 : index
    %31 = vector.load %arg5[%c1_28, %c0_29, %c0_30] : memref<3x8x8xbf16, #tpu.memory_space<vmem>>, vector<1x8x8xbf16>
    %32 = vector.shape_cast %31 : vector<1x8x8xbf16> to vector<8x8xbf16>
    %cst_31 = arith.constant dense<0.000000e+00> : vector<8x128xf32>
    %33 = tpu.matmul %32, %30, %cst_31 {dimension_numbers = #tpu.dot_dimension_numbers<[1], [0], [0], [1], [0, 0, 1, 1], [], []>} : vector<8x8xbf16>, vector<8x128xbf16>, vector<8x128xf32> -> vector<8x128xf32>
    %34 = arith.addf %29, %33 : vector<8x128xf32>
    %c2_32 = arith.constant 2 : index
    %c0_33 = arith.constant 0 : index
    %c0_34 = arith.constant 0 : index
    %35 = vector.load %arg5[%c2_32, %c0_33, %c0_34] : memref<3x8x8xbf16, #tpu.memory_space<vmem>>, vector<1x8x8xbf16>
    %36 = vector.shape_cast %35 : vector<1x8x8xbf16> to vector<8x8xbf16>
    %cst_35 = arith.constant dense<0.000000e+00> : vector<8x128xf32>
    %37 = tpu.matmul %36, %24, %cst_35 {dimension_numbers = #tpu.dot_dimension_numbers<[1], [0], [0], [1], [0, 0, 1, 1], [], []>} : vector<8x8xbf16>, vector<8x128xbf16>, vector<8x128xf32> -> vector<8x128xf32>
    %38 = arith.addf %34, %37 : vector<8x128xf32>
    %c0_36 = arith.constant 0 : index
    %c0_37 = arith.constant 0 : index
    %39 = vector.load %arg6[%c0_36, %c0_37] : memref<8x1xf32, #tpu.memory_space<vmem>>, vector<8x1xf32>
    %40 = vector.broadcast %39 : vector<8x1xf32> to vector<8x128xf32>
    %41 = arith.addf %38, %40 : vector<8x128xf32>
    %cst_38 = arith.constant 0.000000e+00 : f32
    %42 = vector.broadcast %cst_38 : f32 to vector<8x128xf32>
    %43 = arith.maximumf %41, %42 : vector<8x128xf32>
    %c0_39 = arith.constant 0 : index
    %c0_40 = arith.constant 0 : index
    %44 = vector.load %arg7[%c0_39, %c0_40] : memref<8x8xbf16, #tpu.memory_space<vmem>>, vector<8x8xbf16>
    %cst_41 = arith.constant dense<0.000000e+00> : vector<8x128xf32>
    %45 = tpu.matmul %44, %1, %cst_41 {dimension_numbers = #tpu.dot_dimension_numbers<[1], [0], [0], [1], [0, 0, 1, 1], [], []>} : vector<8x8xbf16>, vector<8x128xbf16>, vector<8x128xf32> -> vector<8x128xf32>
    %c0_42 = arith.constant 0 : index
    %c0_43 = arith.constant 0 : index
    %46 = vector.load %arg8[%c0_42, %c0_43] : memref<8x1xf32, #tpu.memory_space<vmem>>, vector<8x1xf32>
    %47 = vector.broadcast %46 : vector<8x1xf32> to vector<8x128xf32>
    %48 = arith.addf %45, %47 : vector<8x128xf32>
    %49 = arith.addf %43, %48 : vector<8x128xf32>
    %c0_44 = arith.constant 0 : index
    %c0_45 = arith.constant 0 : index
    %c0_46 = arith.constant 0 : index
    %50 = vector.load %arg9[%c0_44, %c0_45, %c0_46] : memref<1x8x128xf32, #tpu.memory_space<vmem>>, vector<1x8x128xf32>
    %51 = vector.shape_cast %50 : vector<1x8x128xf32> to vector<8x128xf32>
    %52 = vector.shape_cast %49 : vector<8x128xf32> to vector<1x8x128xf32>
    tpu.vector_store %arg9[%c0_44, %c0_45, %c0_46], %52 {strides = array<i32>} : memref<1x8x128xf32, #tpu.memory_space<vmem>>, vector<1x8x128xf32>,
    return
  }
  func.func @transform_0(%arg0: i32, %arg1: i32) -> (i32, i32, i32) {
    %c0_i32 = arith.constant 0 : i32
    %c0_i32_0 = arith.constant 0 : i32
    return %arg0, %c0_i32, %arg1 : i32, i32, i32
  }
  func.func @transform_1(%arg0: i32, %arg1: i32) -> (i32, i32, i32) {
    %c0_i32 = arith.constant 0 : i32
    %c0_i32_0 = arith.constant 0 : i32
    %c0_i32_1 = arith.constant 0 : i32
    %c0_i32_2 = arith.constant 0 : i32
    return %c0_i32, %c0_i32_0, %c0_i32_1 : i32, i32, i32
  }
  func.func @transform_2(%arg0: i32, %arg1: i32) -> (i32, i32) {
    %c0_i32 = arith.constant 0 : i32
    %c0_i32_0 = arith.constant 0 : i32
    %c0_i32_1 = arith.constant 0 : i32
    return %c0_i32, %c0_i32_0 : i32, i32
  }
  func.func @transform_3(%arg0: i32, %arg1: i32) -> (i32, i32, i32) {
    %c0_i32 = arith.constant 0 : i32
    %c0_i32_0 = arith.constant 0 : i32
    %c0_i32_1 = arith.constant 0 : i32
    %c0_i32_2 = arith.constant 0 : i32
    return %c0_i32, %c0_i32_0, %c0_i32_1 : i32, i32, i32
  }
  func.func @transform_4(%arg0: i32, %arg1: i32) -> (i32, i32) {
    %c0_i32 = arith.constant 0 : i32
    %c0_i32_0 = arith.constant 0 : i32
    %c0_i32_1 = arith.constant 0 : i32
    return %c0_i32, %c0_i32_0 : i32, i32
  }
  func.func @transform_5(%arg0: i32, %arg1: i32) -> (i32, i32) {
    %c0_i32 = arith.constant 0 : i32
    %c0_i32_0 = arith.constant 0 : i32
    %c0_i32_1 = arith.constant 0 : i32
    return %c0_i32, %c0_i32_0 : i32, i32
  }
  func.func @transform_6(%arg0: i32, %arg1: i32) -> (i32, i32) {
    %c0_i32 = arith.constant 0 : i32
    %c0_i32_0 = arith.constant 0 : i32
    %c0_i32_1 = arith.constant 0 : i32
    return %c0_i32, %c0_i32_0 : i32, i32
  }
  func.func @transform_7(%arg0: i32, %arg1: i32) -> (i32, i32, i32) {
    %c0_i32 = arith.constant 0 : i32
    %c0_i32_0 = arith.constant 0 : i32
    return %arg0, %c0_i32, %arg1 : i32, i32, i32
  }
}

</mosaic_0001>

<llo_original>
// kernel: tpu_custom_call.1
$region0: #{tpu_custom_call.1}
  #allocation0 [shape = 'u32[]', space=smem, size = 0x4, offset = 0x4, fixed_abs, tag = 'smem constant byte address 0x4 - core index']
  #allocation1 [shape = 'u32[144,128]{1,0:T(1,128)}', space=vmem, size = 0x12000, scoped, tag = 'internal scratch']
  #allocation2 [shape = 'bf16[8,256]{1,0:T(8,128)(2,1)}', space=vmem, size = 0x1000, scoped, tag = 'scratch operand']
  #allocation3 [shape = 'bf16[8,256]{1,0:T(8,128)(2,1)}', space=vmem, size = 0x1000, scoped, tag = 'scratch operand']
  %s0 = inlined_call_operand.hbm [shape: bf16[2,8,128], index: 0, kind: input, shape index: {}]
  %s1 = inlined_call_operand.vmem [shape: bf16[3,8,8], index: 1, kind: input, shape index: {}]
  %s2 = inlined_call_operand.vmem [shape: f32[8,1], index: 2, kind: input, shape index: {}]
  %s3 = inlined_call_operand.vmem [shape: bf16[3,8,8], index: 3, kind: input, shape index: {}]
  %s4 = inlined_call_operand.vmem [shape: f32[8,1], index: 4, kind: input, shape index: {}]
  %s5 = inlined_call_operand.vmem [shape: bf16[8,8], index: 5, kind: input, shape index: {}]
  %s6 = inlined_call_operand.vmem [shape: f32[8,1], index: 6, kind: input, shape index: {}]
  %s7 = inlined_call_operand.hbm [shape: f32[2,8,128], index: 7, kind: output, shape index: {}]
  %s8 = sld [smem:[#allocation0]]
  $region69: #{tpu_custom_call.1} parent=0
    _
  %s10 = ssub.s32 1, %s8
  %s11 = scalar_select 0, %s10, %s8
  $region1: #{tpu_custom_call.1} parent=0
    #allocation4 [shape = 'u8[4096]{0}', space=vmem, size = 0x1000, scoped, tag = 'input window, operand 0']
    #allocation5 [shape = 's32[2]{0}', space=sflag, size = 0x8, scoped, tag = 'scoped memory for tpu_custom_call.1']
    #allocation6 [shape = 's32[2]{0}', space=sflag, size = 0x8, scoped, tag = 'scoped memory for tpu_custom_call.1']
    #allocation7 [shape = 'u8[8192]{0}', space=vmem, size = 0x2000, scoped, tag = 'output window, operand 0']
    %12 = vsyncpa [#allocation5], 0
    %s13 = scalar_lea.sflag [#allocation5], 1
    %14 = vsyncpa %s13, 0
    %15 = vsyncpa [#allocation6], 0
    %s16 = scalar_lea.sflag [#allocation6], 1
    %17 = vsyncpa %s16, 0
    loop: start=0, step=1, limit=4
    $region2: #{tpu_custom_call.1} parent=1 // loop_pre_header
      _
    $region3: #{tpu_custom_call.1} parent=1 // loop_header
      %s19 = sphi 0, %s23
      %p20 = scmp.ge.s32.totalorder %s19, 4
      %s26 = sphi 0, %s38
      %s27 = sphi 0, %s34
      %s28 = sphi 0, %s26
      %s29 = sphi 0, %s27
      %s30 = sphi 0, %s28
      %s31 = sphi 0, %s29
      %s43 = sphi 0, %s45
      %s46 = sphi 0, %s43
      %s47 = sphi 0, %s46
      %s63 = sphi 0, %s47
      %s67 = sphi 0, %s67
      %s69 = sphi 0, %s67
      %s70 = sphi 0, %s69
      %s84 = sphi 0, %s70
      %s88 = sphi 0, %s88
      %s90 = sphi 0, %s88
      %s91 = sphi 0, %s90
      %s105 = sphi 0, %s91
      %s109 = sphi 0, %s109
      %s111 = sphi 0, %s109
      %s112 = sphi 0, %s111
      %s126 = sphi 0, %s112
      %s130 = sphi 0, %s130
      %s132 = sphi 0, %s130
      %s133 = sphi 0, %s132
      %s147 = sphi 0, %s133
      %s151 = sphi 0, %s151
      %s153 = sphi 0, %s151
      %s154 = sphi 0, %s153
      %s168 = sphi 0, %s154
      %s172 = sphi 0, %s172
      %s174 = sphi 0, %s172
      %s175 = sphi 0, %s174
      %s189 = sphi 0, %s175
      %s197 = sphi 0, %s199
      %s200 = sphi 0, %s197
      %s201 = sphi 0, %s200
      %s217 = sphi 0, %s201
    $region4: #{tpu_custom_call.1} parent=1 // loop_header_branch
      %22 = sbr.rel (%p20) target = $region8
    $region5: #{tpu_custom_call.1} parent=1 // loop_body
      %s24 = ssub.s32 %s19, 1
      %s25 = ssub.s32 %s19, 2
      %s32 = sadd.s32 1, %s27
      %p33 = scmp.ge.s32.totalorder %s32, 1
      %s34 = scalar_select %p33, 0, %s32
      %s35 = sadd.s32 1, %s26
      %s36 = scalar_select %p33, %s35, %s26
      %p37 = scmp.ge.s32.totalorder %s36, 2
      %s38 = scalar_select %p37, 0, %s36
      %s39 = ssub.s32 %s26, %s38
      %s40 = ssub.s32 %s27, %s34
      %s41 = sor.u32 %s39, %s40
      %p42 = scmp.eq.s32.totalorder %s41, 0
      %s44 = sadd.s32 %s43, 1
      %s45 = scalar_select %p42, %s43, %s44
      %p48 = pneg %p42
      %p49 = scmp.eq.s32.totalorder %s19, 1
      %p50 = por %p48, %p49
      %p51 = scmp.ne.s32.totalorder %s43, %s46
      %p52 = scmp.eq.s32.totalorder %s19, 0
      %p53 = por %p51, %p52
      %p54 = scmp.ne.s32.totalorder %s43, %s46
      %p55 = scmp.eq.s32.totalorder %s24, 1
      %p56 = por %p54, %p55
      %p57 = scmp.ne.s32.totalorder %s46, %s47
      %p58 = scmp.eq.s32.totalorder %s24, 0
      %p59 = por %p57, %p58
      %p60 = scmp.ne.s32.totalorder %s46, %s47
      %p61 = scmp.eq.s32.totalorder %s25, 1
      %p62 = por %p60, %p61
      %p64 = scmp.ne.s32.totalorder %s47, %s63
      %p65 = scmp.eq.s32.totalorder %s25, 0
      %p66 = por %p64, %p65
      %s68 = sadd.s32 %s67, 1
      %p71 = scmp.eq.s32.totalorder %s19, 1
      %p72 = scmp.ne.s32.totalorder %s67, %s69
      %p73 = scmp.eq.s32.totalorder %s19, 0
      %p74 = por %p72, %p73
      %p75 = scmp.ne.s32.totalorder %s67, %s69
      %p76 = scmp.eq.s32.totalorder %s24, 1
      %p77 = por %p75, %p76
      %p78 = scmp.ne.s32.totalorder %s69, %s70
      %p79 = scmp.eq.s32.totalorder %s24, 0
      %p80 = por %p78, %p79
      %p81 = scmp.ne.s32.totalorder %s69, %s70
      %p82 = scmp.eq.s32.totalorder %s25, 1
      %p83 = por %p81, %p82
      %p85 = scmp.ne.s32.totalorder %s70, %s84
      %p86 = scmp.eq.s32.totalorder %s25, 0
      %p87 = por %p85, %p86
      %s89 = sadd.s32 %s88, 1
      %p92 = scmp.eq.s32.totalorder %s19, 1
      %p93 = scmp.ne.s32.totalorder %s88, %s90
      %p94 = scmp.eq.s32.totalorder %s19, 0
      %p95 = por %p93, %p94
      %p96 = scmp.ne.s32.totalorder %s88, %s90
      %p97 = scmp.eq.s32.totalorder %s24, 1
      %p98 = por %p96, %p97
      %p99 = scmp.ne.s32.totalorder %s90, %s91
      %p100 = scmp.eq.s32.totalorder %s24, 0
      %p101 = por %p99, %p100
      %p102 = scmp.ne.s32.totalorder %s90, %s91
      %p103 = scmp.eq.s32.totalorder %s25, 1
      %p104 = por %p102, %p103
      %p106 = scmp.ne.s32.totalorder %s91, %s105
      %p107 = scmp.eq.s32.totalorder %s25, 0
      %p108 = por %p106, %p107
      %s110 = sadd.s32 %s109, 1
      %p113 = scmp.eq.s32.totalorder %s19, 1
      %p114 = scmp.ne.s32.totalorder %s109, %s111
      %p115 = scmp.eq.s32.totalorder %s19, 0
      %p116 = por %p114, %p115
      %p117 = scmp.ne.s32.totalorder %s109, %s111
      %p118 = scmp.eq.s32.totalorder %s24, 1
      %p119 = por %p117, %p118
      %p120 = scmp.ne.s32.totalorder %s111, %s112
      %p121 = scmp.eq.s32.totalorder %s24, 0
      %p122 = por %p120, %p121
      %p123 = scmp.ne.s32.totalorder %s111, %s112
      %p124 = scmp.eq.s32.totalorder %s25, 1
      %p125 = por %p123, %p124
      %p127 = scmp.ne.s32.totalorder %s112, %s126
      %p128 = scmp.eq.s32.totalorder %s25, 0
      %p129 = por %p127, %p128
      %s131 = sadd.s32 %s130, 1
      %p134 = scmp.eq.s32.totalorder %s19, 1
      %p135 = scmp.ne.s32.totalorder %s130, %s132
      %p136 = scmp.eq.s32.totalorder %s19, 0
      %p137 = por %p135, %p136
      %p138 = scmp.ne.s32.totalorder %s130, %s132
      %p139 = scmp.eq.s32.totalorder %s24, 1
      %p140 = por %p138, %p139
      %p141 = scmp.ne.s32.totalorder %s132, %s133
      %p142 = scmp.eq.s32.totalorder %s24, 0
      %p143 = por %p141, %p142
      %p144 = scmp.ne.s32.totalorder %s132, %s133
      %p145 = scmp.eq.s32.totalorder %s25, 1
      %p146 = por %p144, %p145
      %p148 = scmp.ne.s32.totalorder %s133, %s147
      %p149 = scmp.eq.s32.totalorder %s25, 0
      %p150 = por %p148, %p149
      %s152 = sadd.s32 %s151, 1
      %p155 = scmp.eq.s32.totalorder %s19, 1
      %p156 = scmp.ne.s32.totalorder %s151, %s153
      %p157 = scmp.eq.s32.totalorder %s19, 0
      %p158 = por %p156, %p157
      %p159 = scmp.ne.s32.totalorder %s151, %s153
      %p160 = scmp.eq.s32.totalorder %s24, 1
      %p161 = por %p159, %p160
      %p162 = scmp.ne.s32.totalorder %s153, %s154
      %p163 = scmp.eq.s32.totalorder %s24, 0
      %p164 = por %p162, %p163
      %p165 = scmp.ne.s32.totalorder %s153, %s154
      %p166 = scmp.eq.s32.totalorder %s25, 1
      %p167 = por %p165, %p166
      %p169 = scmp.ne.s32.totalorder %s154, %s168
      %p170 = scmp.eq.s32.totalorder %s25, 0
      %p171 = por %p169, %p170
      %s173 = sadd.s32 %s172, 1
      %p176 = scmp.eq.s32.totalorder %s19, 1
      %p177 = scmp.ne.s32.totalorder %s172, %s174
      %p178 = scmp.eq.s32.totalorder %s19, 0
      %p179 = por %p177, %p178
      %p180 = scmp.ne.s32.totalorder %s172, %s174
      %p181 = scmp.eq.s32.totalorder %s24, 1
      %p182 = por %p180, %p181
      %p183 = scmp.ne.s32.totalorder %s174, %s175
      %p184 = scmp.eq.s32.totalorder %s24, 0
      %p185 = por %p183, %p184
      %p186 = scmp.ne.s32.totalorder %s174, %s175
      %p187 = scmp.eq.s32.totalorder %s25, 1
      %p188 = por %p186, %p187
      %p190 = scmp.ne.s32.totalorder %s175, %s189
      %p191 = scmp.eq.s32.totalorder %s25, 0
      %p192 = por %p190, %p191
      %s193 = ssub.s32 %s26, %s38
      %s194 = ssub.s32 %s27, %s34
      %s195 = sor.u32 %s193, %s194
      %p196 = scmp.eq.s32.totalorder %s195, 0
      %s198 = sadd.s32 %s197, 1
      %s199 = scalar_select %p196, %s197, %s198
      %p202 = pneg %p196
      %p203 = scmp.eq.s32.totalorder %s19, 1
      %p204 = por %p202, %p203
      %p205 = scmp.ne.s32.totalorder %s197, %s200
      %p206 = scmp.eq.s32.totalorder %s19, 0
      %p207 = por %p205, %p206
      %p208 = scmp.ne.s32.totalorder %s197, %s200
      %p209 = scmp.eq.s32.totalorder %s24, 1
      %p210 = por %p208, %p209
      %p211 = scmp.ne.s32.totalorder %s200, %s201
      %p212 = scmp.eq.s32.totalorder %s24, 0
      %p213 = por %p211, %p212
      %p214 = scmp.ne.s32.totalorder %s200, %s201
      %p215 = scmp.eq.s32.totalorder %s25, 1
      %p216 = por %p214, %p215
      %p218 = scmp.ne.s32.totalorder %s201, %s217
      %p219 = scmp.eq.s32.totalorder %s25, 0
      %p220 = por %p218, %p219
      %p221 = scmp.le.s32.totalorder 1, %s19
      %p222 = scmp.lt.s32.totalorder %s19, 3
      %p223 = pnand %p221, %p222
      %p224 = pneg %p223
      // Predicated region
      $region9: #{tpu_custom_call.1} parent=5 // pred_check
        _
      $region10: #{tpu_custom_call.1} parent=5 // pred_check_branch
        %226 = sbr.rel (%p223) target = $region12
      $region11: #{tpu_custom_call.1} parent=5 // pred_region
        %s227 = ssub.s32 %s19, 1
        // Predicated region
        $region13: #{tpu_custom_call.1} parent=11 // pred_check
          %p228 = pneg %p80
        $region14: #{tpu_custom_call.1} parent=11 // pred_check_branch
          %230 = sbr.rel (%p228) target = $region16
        $region15: #{tpu_custom_call.1} parent=11 // pred_region
          _
        $region16: #{tpu_custom_call.1} parent=11 // pred_fallthru
          _
        // Predicated region
        $region17: #{tpu_custom_call.1} parent=11 // pred_check
          %p231 = pneg %p101
        $region18: #{tpu_custom_call.1} parent=11 // pred_check_branch
          %233 = sbr.rel (%p231) target = $region20
        $region19: #{tpu_custom_call.1} parent=11 // pred_region
          _
        $region20: #{tpu_custom_call.1} parent=11 // pred_fallthru
          _
        // Predicated region
        $region21: #{tpu_custom_call.1} parent=11 // pred_check
          %p234 = pneg %p122
        $region22: #{tpu_custom_call.1} parent=11 // pred_check_branch
          %236 = sbr.rel (%p234) target = $region24
        $region23: #{tpu_custom_call.1} parent=11 // pred_region
          _
        $region24: #{tpu_custom_call.1} parent=11 // pred_fallthru
          _
        // Predicated region
        $region25: #{tpu_custom_call.1} parent=11 // pred_check
          %p237 = pneg %p143
        $region26: #{tpu_custom_call.1} parent=11 // pred_check_branch
          %239 = sbr.rel (%p237) target = $region28
        $region27: #{tpu_custom_call.1} parent=11 // pred_region
          _
        $region28: #{tpu_custom_call.1} parent=11 // pred_fallthru
          _
        // Predicated region
        $region29: #{tpu_custom_call.1} parent=11 // pred_check
          %p240 = pneg %p164
        $region30: #{tpu_custom_call.1} parent=11 // pred_check_branch
          %242 = sbr.rel (%p240) target = $region32
        $region31: #{tpu_custom_call.1} parent=11 // pred_region
          _
        $region32: #{tpu_custom_call.1} parent=11 // pred_fallthru
          _
        // Predicated region
        $region33: #{tpu_custom_call.1} parent=11 // pred_check
          %p243 = pneg %p185
        $region34: #{tpu_custom_call.1} parent=11 // pred_check_branch
          %245 = sbr.rel (%p243) target = $region36
        $region35: #{tpu_custom_call.1} parent=11 // pred_region
          _
        $region36: #{tpu_custom_call.1} parent=11 // pred_fallthru
          _
      $region12: #{tpu_custom_call.1} parent=5 // pred_fallthru
        _
      %p246 = scmp.lt.s32.totalorder %s19, 2
      // Predicated region
      $region37: #{tpu_custom_call.1} parent=5 // pred_check
        %p247 = pneg %p246
      $region38: #{tpu_custom_call.1} parent=5 // pred_check_branch
        %249 = sbr.rel (%p247) target = $region40
      $region39: #{tpu_custom_call.1} parent=5 // pred_region
        // Predicated region
        $region41: #{tpu_custom_call.1} parent=39 // pred_check
          %p250 = pneg %p53
        $region42: #{tpu_custom_call.1} parent=39 // pred_check_branch
          %252 = sbr.rel (%p250) target = $region44
        $region43: #{tpu_custom_call.1} parent=39 // pred_region
          %s253 = sand.u32 %s43, 1
          %s254 = scalar_lea.sflag [#allocation5], %s253
          %s255 = sand.u32 %s43, 1
          %s256 = smul.addr %s255, 4
          %s257 = scalar_lea.vmem [#allocation4], %s256
          %s259 = ssub.s32 64, 64
          %260 = vsyncadd %s254, %s259
          %s261 = sadd.s32 %s27, %s26
          %s262 = smul.addr %s261, 64
          %s263 = scalar_lea.hbm %s0, %s262
          %s265 = sshll.u32 %s257, 4
          %s266 = int_to_ptr.vmem [resolvable:$true] %s265
          %268 = dma.hbm_to_vmem [thread:$0]  %s263, 64, %s266, %s254
        $region44: #{tpu_custom_call.1} parent=39 // pred_fallthru
          _
      $region40: #{tpu_custom_call.1} parent=5 // pred_fallthru
        _
      %p269 = scmp.le.s32.totalorder 1, %s19
      %p270 = scmp.lt.s32.totalorder %s19, 3
      %p271 = pnand %p269, %p270
      %p272 = pneg %p271
      // Predicated region
      $region45: #{tpu_custom_call.1} parent=5 // pred_check
        _
      $region46: #{tpu_custom_call.1} parent=5 // pred_check_branch
        %274 = sbr.rel (%p271) target = $region48
      $region47: #{tpu_custom_call.1} parent=5 // pred_region
        %s275 = ssub.s32 %s19, 1
        %s276 = sand.u32 %s46, 1
        %s277 = scalar_lea.sflag [#allocation5], %s276
        %s278 = sand.u32 %s46, 1
        %s279 = smul.addr %s278, 4
        %s280 = scalar_lea.vmem [#allocation4], %s279
        // Predicated region
        $region49: #{tpu_custom_call.1} parent=47 // pred_check
          %p281 = pneg %p59
        $region50: #{tpu_custom_call.1} parent=47 // pred_check_branch
          %283 = sbr.rel (%p281) target = $region52
        $region51: #{tpu_custom_call.1} parent=47 // pred_region
          %284 = dma.done %s277, 64
        $region52: #{tpu_custom_call.1} parent=47 // pred_fallthru
          _
        %s285 = sand.u32 %s46, 1
        %s286 = scalar_lea.sflag [#allocation5], %s285
        %s287 = sand.u32 %s46, 1
        %s288 = smul.addr %s287, 4
        %s289 = scalar_lea.vmem [#allocation4], %s288
        %p290 = pneg %p59
        %p291 = pneg %p56
        %p292 = pneg %p80
        %p293 = pneg %p77
        %p294 = pneg %p101
        %p295 = pneg %p98
        %p296 = pneg %p122
        %p297 = pneg %p119
        %p298 = pneg %p143
        %p299 = pneg %p140
        %p300 = pneg %p164
        %p301 = pneg %p161
        %p302 = pneg %p185
        %p303 = pneg %p182
        %p304 = pneg %p213
        %p305 = pneg %p210
        %s306 = sand.u32 %s200, 1
        %s307 = scalar_lea.sflag [#allocation6], %s306
        %s308 = sand.u32 %s200, 1
        %s309 = smul.addr %s308, 8
        %s310 = scalar_lea.vmem [#allocation7], %s309
        %v312 = vld [vmem:[%s280] sm:$0xf]
        %p313 = scmp.eq.s32.totalorder %s29, 0
        // Predicated region
        $region53: #{tpu_custom_call.1} parent=47 // pred_check
          %p314 = pneg %p313
        $region54: #{tpu_custom_call.1} parent=47 // pred_check_branch
          %316 = sbr.rel (%p314) target = $region56
        $region55: #{tpu_custom_call.1} parent=47 // pred_region
          %317 = vst [vmem:[#allocation2] sm:$0xf] 0
          %318 = vst [vmem:[#allocation3] sm:$0xf] 0
        $region56: #{tpu_custom_call.1} parent=47 // pred_fallthru
          _
        %319 = vst [vmem:[#allocation2 + $0x4] sm:$0xf] %v312
        %v320 = vld [vmem:[#allocation2] sm:$0xff]
        %v321 = vld [vmem:[%s1] sm:$0xf]
        %s322 = scalar_lea.vmem %s1, 4
        %v323 = vld [vmem:[%s322] sm:$0xf]
        %v325 = vunpack.c.l.b16 %v320
        %v326 = vunpack.c.h.b16 %v320
        %v327 = vpack.c.b16 %v325, %v325
        %v328 = vpack.c.b16 %v326, %v326
        %329 = vrot.lane.b32.xlu0 %v327, 1
        %v330 = vpop.permute.xlu0 %329
        %331 = vrot.lane.b32.xlu0 %v328, 1
        %v332 = vpop.permute.xlu0 %331
        %vm333 = vcmask 7168
        %v334 = vsel %vm333, %v330, %v332
        %vm335 = vcmask 64512
        %v337 = vsel %vm335, %v323, 0
        %vm339 = vcmask 1043456
        %v341 = vsel %vm339, %v334, 0
        %343 = vmatprep.subr.bf16.mxu0 0
        %344 = vmatpush1.bf16.msra.mxu0 %v341
        %345 = vmatprep.subr.bf16.mxu0 0
        %346 = vmatpush1.bf16.msra.mxu0 0
        %347 = vmatprep.subr.bf16.mxu0 0
        %348 = vmatpush1.bf16.msra.mxu0 0
        %349 = vmatprep.subr.bf16.mxu0 0
        %350 = vmatpush1.bf16.msra.mxu0 0
        %351 = vmatprep.subr.bf16.mxu0 0
        %352 = vmatpush1.bf16.msra.mxu0 0
        %353 = vmatprep.subr.bf16.mxu0 0
        %354 = vmatpush1.bf16.msra.mxu0 0
        %355 = vmatprep.subr.bf16.mxu0 0
        %356 = vmatpush1.bf16.msra.mxu0 0
        %357 = vmatprep.subr.bf16.mxu0 0
        %358 = vmatpush1.bf16.msra.mxu0 0
        %359 = vmatprep.subr.bf16.mxu0 0
        %360 = vmatpush1.bf16.msra.mxu0 0
        %361 = vmatprep.subr.bf16.mxu0 0
        %362 = vmatpush1.bf16.msra.mxu0 0
        %363 = vmatprep.subr.bf16.mxu0 0
        %364 = vmatpush1.bf16.msra.mxu0 0
        %365 = vmatprep.subr.bf16.mxu0 0
        %366 = vmatpush1.bf16.msra.mxu0 0
        %367 = vmatprep.subr.bf16.mxu0 0
        %368 = vmatpush1.bf16.msra.mxu0 0
        %369 = vmatprep.subr.bf16.mxu0 0
        %370 = vmatpush1.bf16.msra.mxu0 0
        %371 = vmatprep.subr.bf16.mxu0 0
        %372 = vmatpush1.bf16.msra.mxu0 0
        %373 = vmatprep.subr.bf16.mxu0 0
        %374 = vmatpush1.bf16.msra.mxu0 0
        %375 = vmatprep.mubr.bf16.mxu0 0
        %376 = vmatmul.mubr.bf16.gmra.mrb[0].mxu0 %v337
        %v377 = vpop.f32.mrb[0].mxu0
        %v378 = vadd.f32 0.0, %v377
        %v379 = vpop.f32.mrb[0].mxu0
        %v380 = vpop.f32.mrb[0].mxu0
        %v381 = vpop.f32.mrb[0].mxu0
        %382 = vdwg.mxu0
        %383 = vrot.lane.b32.xlu0 %v327, 2
        %v384 = vpop.permute.xlu0 %383
        %385 = vrot.lane.b32.xlu0 %v328, 2
        %v386 = vpop.permute.xlu0 %385
        %vm387 = vcmask 15360
        %v388 = vsel %vm387, %v384, %v386
        %v390 = vsel %vm335, %v321, 0
        %v393 = vsel %vm339, %v388, 0
        %395 = vmatprep.subr.bf16.mxu0 0
        %396 = vmatpush1.bf16.msra.mxu0 %v393
        %397 = vmatprep.subr.bf16.mxu0 0
        %398 = vmatpush1.bf16.msra.mxu0 0
        %399 = vmatprep.subr.bf16.mxu0 0
        %400 = vmatpush1.bf16.msra.mxu0 0
        %401 = vmatprep.subr.bf16.mxu0 0
        %402 = vmatpush1.bf16.msra.mxu0 0
        %403 = vmatprep.subr.bf16.mxu0 0
        %404 = vmatpush1.bf16.msra.mxu0 0
        %405 = vmatprep.subr.bf16.mxu0 0
        %406 = vmatpush1.bf16.msra.mxu0 0
        %407 = vmatprep.subr.bf16.mxu0 0
        %408 = vmatpush1.bf16.msra.mxu0 0
        %409 = vmatprep.subr.bf16.mxu0 0
        %410 = vmatpush1.bf16.msra.mxu0 0
        %411 = vmatprep.subr.bf16.mxu0 0
        %412 = vmatpush1.bf16.msra.mxu0 0
        %413 = vmatprep.subr.bf16.mxu0 0
        %414 = vmatpush1.bf16.msra.mxu0 0
        %415 = vmatprep.subr.bf16.mxu0 0
        %416 = vmatpush1.bf16.msra.mxu0 0
        %417 = vmatprep.subr.bf16.mxu0 0
        %418 = vmatpush1.bf16.msra.mxu0 0
        %419 = vmatprep.subr.bf16.mxu0 0
        %420 = vmatpush1.bf16.msra.mxu0 0
        %421 = vmatprep.subr.bf16.mxu0 0
        %422 = vmatpush1.bf16.msra.mxu0 0
        %423 = vmatprep.subr.bf16.mxu0 0
        %424 = vmatpush1.bf16.msra.mxu0 0
        %425 = vmatprep.subr.bf16.mxu0 0
        %426 = vmatpush1.bf16.msra.mxu0 0
        %427 = vmatprep.mubr.bf16.mxu0 0
        %428 = vmatmul.mubr.bf16.gmra.mrb[0].mxu0 %v390
        %v429 = vpop.f32.mrb[0].mxu0
        %v430 = vadd.f32 %v378, %v429
        %v431 = vpop.f32.mrb[0].mxu0
        %v432 = vpop.f32.mrb[0].mxu0
        %v433 = vpop.f32.mrb[0].mxu0
        %434 = vdwg.mxu0
        %s435 = scalar_lea.vmem %s1, 8
        %v436 = vld [vmem:[%s435] sm:$0xf]
        %v438 = vsel %vm335, %v436, 0
        %v441 = vsel %vm339, %v312, 0
        %443 = vmatprep.subr.bf16.mxu0 0
        %444 = vmatpush1.bf16.msra.mxu0 %v441
        %445 = vmatprep.subr.bf16.mxu0 0
        %446 = vmatpush1.bf16.msra.mxu0 0
        %447 = vmatprep.subr.bf16.mxu0 0
        %448 = vmatpush1.bf16.msra.mxu0 0
        %449 = vmatprep.subr.bf16.mxu0 0
        %450 = vmatpush1.bf16.msra.mxu0 0
        %451 = vmatprep.subr.bf16.mxu0 0
        %452 = vmatpush1.bf16.msra.mxu0 0
        %453 = vmatprep.subr.bf16.mxu0 0
        %454 = vmatpush1.bf16.msra.mxu0 0
        %455 = vmatprep.subr.bf16.mxu0 0
        %456 = vmatpush1.bf16.msra.mxu0 0
        %457 = vmatprep.subr.bf16.mxu0 0
        %458 = vmatpush1.bf16.msra.mxu0 0
        %459 = vmatprep.subr.bf16.mxu0 0
        %460 = vmatpush1.bf16.msra.mxu0 0
        %461 = vmatprep.subr.bf16.mxu0 0
        %462 = vmatpush1.bf16.msra.mxu0 0
        %463 = vmatprep.subr.bf16.mxu0 0
        %464 = vmatpush1.bf16.msra.mxu0 0
        %465 = vmatprep.subr.bf16.mxu0 0
        %466 = vmatpush1.bf16.msra.mxu0 0
        %467 = vmatprep.subr.bf16.mxu0 0
        %468 = vmatpush1.bf16.msra.mxu0 0
        %469 = vmatprep.subr.bf16.mxu0 0
        %470 = vmatpush1.bf16.msra.mxu0 0
        %471 = vmatprep.subr.bf16.mxu0 0
        %472 = vmatpush1.bf16.msra.mxu0 0
        %473 = vmatprep.subr.bf16.mxu0 0
        %474 = vmatpush1.bf16.msra.mxu0 0
        %475 = vmatprep.mubr.bf16.mxu0 0
        %476 = vmatmul.mubr.bf16.gmra.mrb[0].mxu0 %v438
        %v477 = vpop.f32.mrb[0].mxu0
        %v478 = vadd.f32 0.0, %v477
        %v479 = vpop.f32.mrb[0].mxu0
        %v480 = vpop.f32.mrb[0].mxu0
        %v481 = vpop.f32.mrb[0].mxu0
        %482 = vdwg.mxu0
        %v483 = vadd.f32 %v430, %v478
        %v484 = vld [vmem:[%s2] sm:$0xff]
        %486 = vset.pattern.permute.xlu0 0
        %487 = vperm.xlu0 %486, %v484
        %v488 = vpop.permute.xlu0 %487
        %v490 = vadd.f32 %v483, %v488
        %v491 = vmax.f32 %v490, 0.0
        %v492 = vpack.c.bf16 %v491, %v491
        %493 = vst [vmem:[#allocation3 + $0x4] sm:$0xf] %v492
        %v494 = vld [vmem:[#allocation3] sm:$0xff]
        %v495 = vld [vmem:[%s3] sm:$0xf]
        %s496 = scalar_lea.vmem %s3, 4
        %v497 = vld [vmem:[%s496] sm:$0xf]
        %v499 = vunpack.c.l.b16 %v494
        %v500 = vunpack.c.h.b16 %v494
        %v501 = vpack.c.b16 %v499, %v499
        %v502 = vpack.c.b16 %v500, %v500
        %503 = vrot.lane.b32.xlu0 %v501, 1
        %v504 = vpop.permute.xlu0 %503
        %505 = vrot.lane.b32.xlu0 %v502, 1
        %v506 = vpop.permute.xlu0 %505
        %v507 = vsel %vm333, %v504, %v506
        %v509 = vsel %vm335, %v497, 0
        %v512 = vsel %vm339, %v507, 0
        %514 = vmatprep.subr.bf16.mxu0 0
        %515 = vmatpush1.bf16.msra.mxu0 %v512
        %516 = vmatprep.subr.bf16.mxu0 0
        %517 = vmatpush1.bf16.msra.mxu0 0
        %518 = vmatprep.subr.bf16.mxu0 0
        %519 = vmatpush1.bf16.msra.mxu0 0
        %520 = vmatprep.subr.bf16.mxu0 0
        %521 = vmatpush1.bf16.msra.mxu0 0
        %522 = vmatprep.subr.bf16.mxu0 0
        %523 = vmatpush1.bf16.msra.mxu0 0
        %524 = vmatprep.subr.bf16.mxu0 0
        %525 = vmatpush1.bf16.msra.mxu0 0
        %526 = vmatprep.subr.bf16.mxu0 0
        %527 = vmatpush1.bf16.msra.mxu0 0
        %528 = vmatprep.subr.bf16.mxu0 0
        %529 = vmatpush1.bf16.msra.mxu0 0
        %530 = vmatprep.subr.bf16.mxu0 0
        %531 = vmatpush1.bf16.msra.mxu0 0
        %532 = vmatprep.subr.bf16.mxu0 0
        %533 = vmatpush1.bf16.msra.mxu0 0
        %534 = vmatprep.subr.bf16.mxu0 0
        %535 = vmatpush1.bf16.msra.mxu0 0
        %536 = vmatprep.subr.bf16.mxu0 0
        %537 = vmatpush1.bf16.msra.mxu0 0
        %538 = vmatprep.subr.bf16.mxu0 0
        %539 = vmatpush1.bf16.msra.mxu0 0
        %540 = vmatprep.subr.bf16.mxu0 0
        %541 = vmatpush1.bf16.msra.mxu0 0
        %542 = vmatprep.subr.bf16.mxu0 0
        %543 = vmatpush1.bf16.msra.mxu0 0
        %544 = vmatprep.subr.bf16.mxu0 0
        %545 = vmatpush1.bf16.msra.mxu0 0
        %546 = vmatprep.mubr.bf16.mxu0 0
        %547 = vmatmul.mubr.bf16.gmra.mrb[0].mxu0 %v509
        %v548 = vpop.f32.mrb[0].mxu0
        %v549 = vadd.f32 0.0, %v548
        %v550 = vpop.f32.mrb[0].mxu0
        %v551 = vpop.f32.mrb[0].mxu0
        %v552 = vpop.f32.mrb[0].mxu0
        %553 = vdwg.mxu0
        %554 = vrot.lane.b32.xlu0 %v501, 2
        %v555 = vpop.permute.xlu0 %554
        %556 = vrot.lane.b32.xlu0 %v502, 2
        %v557 = vpop.permute.xlu0 %556
        %v558 = vsel %vm387, %v555, %v557
        %v560 = vsel %vm335, %v495, 0
        %v563 = vsel %vm339, %v558, 0
        %565 = vmatprep.subr.bf16.mxu0 0
        %566 = vmatpush1.bf16.msra.mxu0 %v563
        %567 = vmatprep.subr.bf16.mxu0 0
        %568 = vmatpush1.bf16.msra.mxu0 0
        %569 = vmatprep.subr.bf16.mxu0 0
        %570 = vmatpush1.bf16.msra.mxu0 0
        %571 = vmatprep.subr.bf16.mxu0 0
        %572 = vmatpush1.bf16.msra.mxu0 0
        %573 = vmatprep.subr.bf16.mxu0 0
        %574 = vmatpush1.bf16.msra.mxu0 0
        %575 = vmatprep.subr.bf16.mxu0 0
        %576 = vmatpush1.bf16.msra.mxu0 0
        %577 = vmatprep.subr.bf16.mxu0 0
        %578 = vmatpush1.bf16.msra.mxu0 0
        %579 = vmatprep.subr.bf16.mxu0 0
        %580 = vmatpush1.bf16.msra.mxu0 0
        %581 = vmatprep.subr.bf16.mxu0 0
        %582 = vmatpush1.bf16.msra.mxu0 0
        %583 = vmatprep.subr.bf16.mxu0 0
        %584 = vmatpush1.bf16.msra.mxu0 0
        %585 = vmatprep.subr.bf16.mxu0 0
        %586 = vmatpush1.bf16.msra.mxu0 0
        %587 = vmatprep.subr.bf16.mxu0 0
        %588 = vmatpush1.bf16.msra.mxu0 0
        %589 = vmatprep.subr.bf16.mxu0 0
        %590 = vmatpush1.bf16.msra.mxu0 0
        %591 = vmatprep.subr.bf16.mxu0 0
        %592 = vmatpush1.bf16.msra.mxu0 0
        %593 = vmatprep.subr.bf16.mxu0 0
        %594 = vmatpush1.bf16.msra.mxu0 0
        %595 = vmatprep.subr.bf16.mxu0 0
        %596 = vmatpush1.bf16.msra.mxu0 0
        %597 = vmatprep.mubr.bf16.mxu0 0
        %598 = vmatmul.mubr.bf16.gmra.mrb[0].mxu0 %v560
        %v599 = vpop.f32.mrb[0].mxu0
        %v600 = vadd.f32 %v549, %v599
        %v601 = vpop.f32.mrb[0].mxu0
        %v602 = vpop.f32.mrb[0].mxu0
        %v603 = vpop.f32.mrb[0].mxu0
        %604 = vdwg.mxu0
        %s605 = scalar_lea.vmem %s3, 8
        %v606 = vld [vmem:[%s605] sm:$0xf]
        %v608 = vsel %vm335, %v606, 0
        %v611 = vsel %vm339, %v492, 0
        %613 = vmatprep.subr.bf16.mxu0 0
        %614 = vmatpush1.bf16.msra.mxu0 %v611
        %615 = vmatprep.subr.bf16.mxu0 0
        %616 = vmatpush1.bf16.msra.mxu0 0
        %617 = vmatprep.subr.bf16.mxu0 0
        %618 = vmatpush1.bf16.msra.mxu0 0
        %619 = vmatprep.subr.bf16.mxu0 0
        %620 = vmatpush1.bf16.msra.mxu0 0
        %621 = vmatprep.subr.bf16.mxu0 0
        %622 = vmatpush1.bf16.msra.mxu0 0
        %623 = vmatprep.subr.bf16.mxu0 0
        %624 = vmatpush1.bf16.msra.mxu0 0
        %625 = vmatprep.subr.bf16.mxu0 0
        %626 = vmatpush1.bf16.msra.mxu0 0
        %627 = vmatprep.subr.bf16.mxu0 0
        %628 = vmatpush1.bf16.msra.mxu0 0
        %629 = vmatprep.subr.bf16.mxu0 0
        %630 = vmatpush1.bf16.msra.mxu0 0
        %631 = vmatprep.subr.bf16.mxu0 0
        %632 = vmatpush1.bf16.msra.mxu0 0
        %633 = vmatprep.subr.bf16.mxu0 0
        %634 = vmatpush1.bf16.msra.mxu0 0
        %635 = vmatprep.subr.bf16.mxu0 0
        %636 = vmatpush1.bf16.msra.mxu0 0
        %637 = vmatprep.subr.bf16.mxu0 0
        %638 = vmatpush1.bf16.msra.mxu0 0
        %639 = vmatprep.subr.bf16.mxu0 0
        %640 = vmatpush1.bf16.msra.mxu0 0
        %641 = vmatprep.subr.bf16.mxu0 0
        %642 = vmatpush1.bf16.msra.mxu0 0
        %643 = vmatprep.subr.bf16.mxu0 0
        %644 = vmatpush1.bf16.msra.mxu0 0
        %645 = vmatprep.mubr.bf16.mxu0 0
        %646 = vmatmul.mubr.bf16.gmra.mrb[0].mxu0 %v608
        %v647 = vpop.f32.mrb[0].mxu0
        %v648 = vadd.f32 0.0, %v647
        %v649 = vpop.f32.mrb[0].mxu0
        %v650 = vpop.f32.mrb[0].mxu0
        %v651 = vpop.f32.mrb[0].mxu0
        %652 = vdwg.mxu0
        %v653 = vadd.f32 %v600, %v648
        %v654 = vld [vmem:[%s4] sm:$0xff]
        %656 = vset.pattern.permute.xlu0 0
        %657 = vperm.xlu0 %656, %v654
        %v658 = vpop.permute.xlu0 %657
        %v660 = vadd.f32 %v653, %v658
        %v661 = vmax.f32 %v660, 0.0
        %v662 = vld [vmem:[%s5] sm:$0xf]
        %v663 = vld [vmem:[%s6] sm:$0xff]
        %665 = vset.pattern.permute.xlu0 0
        %666 = vperm.xlu0 %665, %v663
        %v667 = vpop.permute.xlu0 %666
        %v670 = vsel %vm335, %v662, 0
        %672 = vmatprep.subr.bf16.mxu0 0
        %673 = vmatpush1.bf16.msra.mxu0 %v441
        %674 = vmatprep.subr.bf16.mxu0 0
        %675 = vmatpush1.bf16.msra.mxu0 0
        %676 = vmatprep.subr.bf16.mxu0 0
        %677 = vmatpush1.bf16.msra.mxu0 0
        %678 = vmatprep.subr.bf16.mxu0 0
        %679 = vmatpush1.bf16.msra.mxu0 0
        %680 = vmatprep.subr.bf16.mxu0 0
        %681 = vmatpush1.bf16.msra.mxu0 0
        %682 = vmatprep.subr.bf16.mxu0 0
        %683 = vmatpush1.bf16.msra.mxu0 0
        %684 = vmatprep.subr.bf16.mxu0 0
        %685 = vmatpush1.bf16.msra.mxu0 0
        %686 = vmatprep.subr.bf16.mxu0 0
        %687 = vmatpush1.bf16.msra.mxu0 0
        %688 = vmatprep.subr.bf16.mxu0 0
        %689 = vmatpush1.bf16.msra.mxu0 0
        %690 = vmatprep.subr.bf16.mxu0 0
        %691 = vmatpush1.bf16.msra.mxu0 0
        %692 = vmatprep.subr.bf16.mxu0 0
        %693 = vmatpush1.bf16.msra.mxu0 0
        %694 = vmatprep.subr.bf16.mxu0 0
        %695 = vmatpush1.bf16.msra.mxu0 0
        %696 = vmatprep.subr.bf16.mxu0 0
        %697 = vmatpush1.bf16.msra.mxu0 0
        %698 = vmatprep.subr.bf16.mxu0 0
        %699 = vmatpush1.bf16.msra.mxu0 0
        %700 = vmatprep.subr.bf16.mxu0 0
        %701 = vmatpush1.bf16.msra.mxu0 0
        %702 = vmatprep.subr.bf16.mxu0 0
        %703 = vmatpush1.bf16.msra.mxu0 0
        %704 = vmatprep.mubr.bf16.mxu0 0
        %705 = vmatmul.mubr.bf16.gmra.mrb[0].mxu0 %v670
        %v706 = vpop.f32.mrb[0].mxu0
        %v707 = vadd.f32 %v667, %v706
        %v708 = vpop.f32.mrb[0].mxu0
        %v709 = vpop.f32.mrb[0].mxu0
        %v710 = vpop.f32.mrb[0].mxu0
        %711 = vdwg.mxu0
        %v712 = vadd.f32 %v661, %v707
        %713 = vst [vmem:[%s310] sm:$0xff] %v712
        %s714 = sand.u32 %s200, 1
        %s715 = scalar_lea.sflag [#allocation6], %s714
        %s716 = sand.u32 %s200, 1
        %s717 = smul.addr %s716, 8
        %s718 = scalar_lea.vmem [#allocation7], %s717
        // Predicated region
        $region57: #{tpu_custom_call.1} parent=47 // pred_check
          %p719 = pneg %p210
        $region58: #{tpu_custom_call.1} parent=47 // pred_check_branch
          %721 = sbr.rel (%p719) target = $region60
        $region59: #{tpu_custom_call.1} parent=47 // pred_region
          %s723 = ssub.s32 128, 128
          %724 = vsyncadd %s715, %s723
          %s725 = sadd.s32 %s29, %s28
          %s726 = smul.addr %s725, 128
          %s727 = scalar_lea.hbm %s7, %s726
          %s729 = sshll.u32 %s718, 4
          %s730 = int_to_ptr.vmem [resolvable:$true] %s729
          %732 = dma.vmem_to_hbm [thread:$0]  %s730, 128, %s727, %s715
        $region60: #{tpu_custom_call.1} parent=47 // pred_fallthru
          _
      $region48: #{tpu_custom_call.1} parent=5 // pred_fallthru
        _
      %p733 = scmp.le.s32.totalorder 2, %s19
      // Predicated region
      $region61: #{tpu_custom_call.1} parent=5 // pred_check
        %p734 = pneg %p733
      $region62: #{tpu_custom_call.1} parent=5 // pred_check_branch
        %736 = sbr.rel (%p734) target = $region64
      $region63: #{tpu_custom_call.1} parent=5 // pred_region
        %s737 = ssub.s32 %s19, 2
        // Predicated region
        $region65: #{tpu_custom_call.1} parent=63 // pred_check
          %p738 = pneg %p216
        $region66: #{tpu_custom_call.1} parent=63 // pred_check_branch
          %740 = sbr.rel (%p738) target = $region68
        $region67: #{tpu_custom_call.1} parent=63 // pred_region
          %s741 = sand.u32 %s201, 1
          %s742 = scalar_lea.sflag [#allocation6], %s741
          %s743 = sand.u32 %s201, 1
          %s744 = smul.addr %s743, 8
          %s745 = scalar_lea.vmem [#allocation7], %s744
          %746 = dma.done %s742, 128
        $region68: #{tpu_custom_call.1} parent=63 // pred_fallthru
          _
      $region64: #{tpu_custom_call.1} parent=5 // pred_fallthru
        _
    $region6: #{tpu_custom_call.1} parent=1 // loop_footer
      %s23 = sadd.s32 1, %s19
    $region7: #{tpu_custom_call.1} parent=1 // loop_footer_branch
      %18 = sbr.rel target = $region3
    $region8: #{tpu_custom_call.1} parent=1 // loop_exit
      _
    %747 = vsyncpa [#allocation5], 1
    %s748 = scalar_lea.sflag [#allocation5], 1
    %749 = vsyncpa %s748, 1
    %750 = vsyncpa [#allocation6], 1
    %s751 = scalar_lea.sflag [#allocation6], 1
    %752 = vsyncpa %s751, 1

</llo_original>
